<compile_context>
chip_gen: v7x
topology: tpu7x:2x2x1
jax: 0.10.0
libtpu: 0.0.40
codegen_flags: <defaults>
</compile_context>

<pallas_src>
import functools

import jax
import jax.numpy as jnp
from jax.experimental import pallas as pl
from jax.experimental.pallas import tpu as pltpu


def _round_up(x, m):
    return ((x + m - 1) // m) * m


def gru_kernel(x_ref, w_ih_ref, w_hh_ref, b_ih_ref, b_hh_ref,
               hidden_ref, h_scr, gi_scr,
               *, T, Tc, Bp, H, packed, unroll):
    """One grid step processes Tc timesteps of the GRU recurrence.

    x_ref:      (Tc*Bp, E)   this chunk's embedded tokens (time-major rows)
    w_ih_ref:   (E,  W)      input->gates weights (packed/per-gate layout)
    w_hh_ref:   (Hw, W)      hidden->gates weights; Hw == hidden-carry width
    b_ih_ref:   (1,  W)
    b_hh_ref:   (1,  W)
    hidden_ref: (Bp, Hw)     output: final hidden state (written on last chunk)
    h_scr:      (Bp, Hw)     persistent f32 hidden carry across chunks
    gi_scr:     (Tc*Bp, W)   VMEM scratch: this chunk's input projections
    """
    chunk = pl.program_id(0)
    n_chunks = pl.num_programs(0)

    @pl.when(chunk == 0)
    def _():
        h_scr[...] = jnp.zeros_like(h_scr)

    # ---- Prologue: one batched MXU matmul for all Tc timesteps of this chunk.
    gi_scr[...] = (jnp.dot(x_ref[...], w_ih_ref[...],
                           preferred_element_type=jnp.float32)
                   + b_ih_ref[...])

    # Hoist loop-invariant operands out of the recurrence.
    w_hh = w_hh_ref[...]
    b_hh = b_hh_ref[...]
    mm_dtype = w_hh.dtype
    t0 = chunk * Tc                      # global time offset of this chunk
    needs_mask = (T % Tc) != 0           # only last chunk may contain padding

    def step(t, h_prev):
        row = pl.multiple_of(t * Bp, Bp)
        gi = gi_scr[pl.ds(row, Bp), :]                          # (Bp, W) f32
        gh = jnp.dot(h_prev.astype(mm_dtype), w_hh,
                     preferred_element_type=jnp.float32) + b_hh  # (Bp, W) f32
        if packed:
            # Gates packed [r|z|n|pad] in one 128-lane tile; hidden state lives
            # in the n-gate lanes [2H, 3H).  Lane alignment via roll (XLU).
            s = jax.nn.sigmoid(gi + gh)            # r @ [0,H), z @ [H,2H)
            r_n = pltpu.roll(s, shift=2 * H, axis=1)   # r moved to [2H,3H)
            z_n = pltpu.roll(s, shift=H, axis=1)       # z moved to [2H,3H)
            n = jnp.tanh(gi + r_n * gh)            # valid @ [2H,3H)
            h_new = (1.0 - z_n) * n + z_n * h_prev
        else:
            # Per-gate 128-lane-aligned layout (3H > 128): free static views.
            Hg = w_hh.shape[0]
            i_r, i_z, i_n = gi[:, :Hg], gi[:, Hg:2 * Hg], gi[:, 2 * Hg:]
            h_r, h_z, h_n = gh[:, :Hg], gh[:, Hg:2 * Hg], gh[:, 2 * Hg:]
            r = jax.nn.sigmoid(i_r + h_r)
            z = jax.nn.sigmoid(i_z + h_z)
            n = jnp.tanh(i_n + r * h_n)
            h_new = (1.0 - z) * n + z * h_prev
        if needs_mask:
            # Time-padding steps (last chunk only): carry h through unchanged.
            h_new = jnp.where((t0 + t) < T, h_new, h_prev)
        return h_new

    h_final = jax.lax.fori_loop(0, Tc, step, h_scr[...], unroll=unroll)
    h_scr[...] = h_final

    @pl.when(chunk == n_chunks - 1)
    def _():
        hidden_ref[...] = h_final


def prepare_params(raw, *, matmul_dtype=jnp.float32):
    """Convert PyTorch-layout parameters into the kernel layout (done once).

    matmul_dtype=jnp.bfloat16 is the recommended lever on v6e/v7x (native MXU
    operands, half the x/weight DMA + VMEM); accumulation / gate math stay f32.
    """
    emb = jnp.asarray(raw["embedding"], jnp.float32)     # (V, E)
    w_ih = jnp.asarray(raw["w_ih"], jnp.float32)         # (3H, E)
    w_hh = jnp.asarray(raw["w_hh"], jnp.float32)         # (3H, H)
    b_ih = jnp.asarray(raw["b_ih"], jnp.float32)         # (3H,)
    b_hh = jnp.asarray(raw["b_hh"], jnp.float32)         # (3H,)
    w_lin = jnp.asarray(raw["w_lin"], jnp.float32)       # (C, H)
    b_lin = jnp.asarray(raw["b_lin"], jnp.float32)       # (C,)

    V, E = emb.shape
    H = w_hh.shape[1]
    packed = (3 * H <= 128)
    if packed:
        Hg, W, Hw = H, 128, 128          # gate stride, gate width, h-carry width
        h_off = 2 * H                    # hidden lives in the n-gate lanes
        hh_row0 = 2 * H                  # w_hh rows that multiply the hidden
    else:
        Hp = _round_up(H, 128)
        Hg, W, Hw = Hp, 3 * Hp, Hp
        h_off = 0
        hh_row0 = 0

    w_ih_p = jnp.zeros((E, W), jnp.float32)
    w_hh_p = jnp.zeros((Hw, W), jnp.float32)
    b_ih_p = jnp.zeros((1, W), jnp.float32)
    b_hh_p = jnp.zeros((1, W), jnp.float32)
    for g in range(3):                   # gate order [r, z, n]
        w_ih_p = w_ih_p.at[:, g * Hg:g * Hg + H].set(w_ih[g * H:(g + 1) * H, :].T)
        w_hh_p = w_hh_p.at[hh_row0:hh_row0 + H, g * Hg:g * Hg + H].set(
            w_hh[g * H:(g + 1) * H, :].T)
        b_ih_p = b_ih_p.at[0, g * Hg:g * Hg + H].set(b_ih[g * H:(g + 1) * H])
        b_hh_p = b_hh_p.at[0, g * Hg:g * Hg + H].set(b_hh[g * H:(g + 1) * H])

    return {
        "emb": emb.astype(matmul_dtype),          # (V, E) -- NOT lane-padded
        "w_ih": w_ih_p.astype(matmul_dtype),      # (E, W)
        "w_hh": w_hh_p.astype(matmul_dtype),      # (Hw, W)
        "b_ih": b_ih_p,                           # (1, W) f32
        "b_hh": b_hh_p,                           # (1, W) f32
        "w_lin_t": w_lin.T,                       # (H, C) pre-transposed
        "b_lin": b_lin,                           # (C,)
        "hidden_dim": H,
        "h_off": h_off,
        "packed": packed,
    }


def gru_forward(seq, params, *, time_chunk=None):
    """seq: int32 (B, T) token ids.  Returns (logprob (B, C), hidden (1, B, H))."""
    emb = params["emb"]
    w_ih, w_hh = params["w_ih"], params["w_hh"]
    b_ih, b_hh = params["b_ih"], params["b_hh"]
    H = params["hidden_dim"]
    h_off = params["h_off"]
    packed = params["packed"]

    B, T = seq.shape
    E = emb.shape[1]
    Hw, W = w_hh.shape
    Bp = _round_up(B, 8)

    # ---- Time chunking: keep the per-chunk working set (double-buffered x +
    # gi scratch) within ~8 MiB; rebalance so chunks are even-sized.
    per_step_bytes = Bp * (2 * E * emb.dtype.itemsize + W * 4)
    if time_chunk is None:
        time_chunk = max(1, min(T, (8 << 20) // max(per_step_bytes, 1), 256))
    n_chunks = pl.cdiv(T, int(time_chunk))
    Tc = pl.cdiv(T, n_chunks)
    n_chunks = pl.cdiv(T, Tc)
    Tp = n_chunks * Tc

    # Pad the *token ids* (cheap) instead of the embedded slab, then gather
    # directly into time-major order.  Padded rows/steps never feed real rows.
    seq_p = jnp.zeros((Bp, Tp), seq.dtype).at[:B, :T].set(seq)
    x = emb[seq_p.T].reshape(Tp * Bp, E)          # (Tp*Bp, E), time-major

    kernel = functools.partial(
        gru_kernel, T=T, Tc=Tc, Bp=Bp, H=H, packed=packed,
        unroll=int(min(Tc, 8)))

    # Explicit VMEM budget (double-buffered inputs + scratch + output).
    est_vmem = (2 * Tc * Bp * E * x.dtype.itemsize          # x chunk x2
                + Tc * Bp * W * 4                           # gi scratch
                + 2 * (E + Hw) * W * w_ih.dtype.itemsize    # weights x2
                + 4 * W * 4                                 # biases x2
                + 3 * Bp * Hw * 4)                          # out x2 + h carry
    vmem_limit = int(min(48 << 20, max(32 << 20, 4 * est_vmem)))

    hidden_pad = pl.pallas_call(
        kernel,
        out_shape=jax.ShapeDtypeStruct((Bp, Hw), jnp.float32),
        grid_spec=pltpu.PrefetchScalarGridSpec(
            num_scalar_prefetch=0,
            grid=(n_chunks,),
            in_specs=[
                pl.BlockSpec((Tc * Bp, E), lambda t: (t, 0)),   # x chunk
                pl.BlockSpec((E, W), lambda t: (0, 0)),         # w_ih
                pl.BlockSpec((Hw, W), lambda t: (0, 0)),        # w_hh
                pl.BlockSpec((1, W), lambda t: (0, 0)),         # b_ih
                pl.BlockSpec((1, W), lambda t: (0, 0)),         # b_hh
            ],
            out_specs=pl.BlockSpec((Bp, Hw), lambda t: (0, 0)),
            scratch_shapes=[
                pltpu.VMEM((Bp, Hw), jnp.float32),       # persistent h carry
                pltpu.VMEM((Tc * Bp, W), jnp.float32),   # chunk input proj.
            ],
        ),
        compiler_params=pltpu.CompilerParams(
            dimension_semantics=("arbitrary",),
            vmem_limit_bytes=vmem_limit),
    )(x, w_ih, w_hh, b_ih, b_hh)

    h = hidden_pad[:B, h_off:h_off + H]                       # (B, H)

    # Classifier + log-softmax in the wrapper (lane-sparse C=10 output; XLA
    # fuses this downstream).
    logits = h @ params["w_lin_t"] + params["b_lin"]
    logp = jax.nn.log_softmax(logits, axis=1)
    # TODO(synk): nn.Dropout is identity in eval mode; no stochastic mask applied.
    return logp, h.reshape(1, B, H)


def init_params(key, vocab_size, emb_dim, hidden_dim, num_classes=10):
    ks = jax.random.split(key, 7)
    k_gru = 1.0 / jnp.sqrt(hidden_dim)
    k_lin = 1.0 / jnp.sqrt(hidden_dim)
    return {
        "embedding": jax.random.normal(ks[0], (vocab_size, emb_dim), jnp.float32),
        "w_ih": jax.random.uniform(ks[1], (3 * hidden_dim, emb_dim),
                                   jnp.float32, -k_gru, k_gru),
        "w_hh": jax.random.uniform(ks[2], (3 * hidden_dim, hidden_dim),
                                   jnp.float32, -k_gru, k_gru),
        "b_ih": jax.random.uniform(ks[3], (3 * hidden_dim,),
                                   jnp.float32, -k_gru, k_gru),
        "b_hh": jax.random.uniform(ks[4], (3 * hidden_dim,),
                                   jnp.float32, -k_gru, k_gru),
        "w_lin": jax.random.uniform(ks[5], (num_classes, hidden_dim),
                                    jnp.float32, -k_lin, k_lin),
        "b_lin": jax.random.uniform(ks[6], (num_classes,),
                                    jnp.float32, -k_lin, k_lin),
    }


def gru_reference(seq, raw):
    """Plain-JAX reference of the same forward pass (PyTorch GRU semantics)."""
    x = raw["embedding"][seq]                    # (B, T, E)
    H = raw["w_hh"].shape[1]
    B, T = seq.shape
    h = jnp.zeros((B, H), jnp.float32)
    hp = jax.lax.Precision.HIGHEST
    for t in range(T):
        gi = jnp.dot(x[:, t, :], raw["w_ih"].T, precision=hp) + raw["b_ih"]
        gh = jnp.dot(h, raw["w_hh"].T, precision=hp) + raw["b_hh"]
        i_r, i_z, i_n = jnp.split(gi, 3, axis=1)
        h_r, h_z, h_n = jnp.split(gh, 3, axis=1)
        r = jax.nn.sigmoid(i_r + h_r)
        z = jax.nn.sigmoid(i_z + h_z)
        n = jnp.tanh(i_n + r * h_n)
        h = (1.0 - z) * n + z * h
    logits = jnp.dot(h, raw["w_lin"].T, precision=hp) + raw["b_lin"]
    return jax.nn.log_softmax(logits, axis=1), h.reshape(1, B, H)


if __name__ == "__main__":
    VOCAB, EMB, HID = 20, 16, 32
    B, T = 2, 8

    key = jax.random.PRNGKey(0)
    k_param, k_seq, k_param2 = jax.random.split(key, 3)
    raw = init_params(k_param, VOCAB, EMB, HID)
    seq = jax.random.randint(k_seq, (B, T), 0, VOCAB, dtype=jnp.int32)

    # ---- f32 operands (matches PyTorch numerics), packed-gate path (3H<=128).
    params = prepare_params(raw)
    logp, hidden = gru_forward(seq, params)
    jax.block_until_ready((logp, hidden))

    assert logp.shape == (B, 10)
    assert hidden.shape == (1, B, HID)
    assert bool(jnp.allclose(jnp.sum(jnp.exp(logp), axis=1), 1.0, atol=1e-4))

    logp_ref, hidden_ref = gru_reference(seq, raw)
    assert bool(jnp.allclose(logp, logp_ref, atol=5e-2))
    assert bool(jnp.allclose(hidden, hidden_ref, atol=5e-2))

    # ---- bf16 operand path (recommended default on v6e/v7x); f32 accumulate
    # and f32 gate math, so a modest tolerance suffices at T=8.
    params_bf16 = prepare_params(raw, matmul_dtype=jnp.bfloat16)
    logp16, hidden16 = gru_forward(seq, params_bf16)
    jax.block_until_ready((logp16, hidden16))
    assert bool(jnp.allclose(logp16, logp_ref, atol=1e-1))
    assert bool(jnp.allclose(hidden16, hidden_ref, atol=1e-1))

    # ---- Multi-chunk grid with a partial last chunk (exercises the time mask).
    T2 = 20
    seq2 = jax.random.randint(jax.random.fold_in(k_seq, 1), (B, T2), 0, VOCAB,
                              dtype=jnp.int32)
    logp_c, hidden_c = gru_forward(seq2, params, time_chunk=8)   # 3 chunks
    jax.block_until_ready((logp_c, hidden_c))
    logp_c_ref, hidden_c_ref = gru_reference(seq2, raw)
    assert bool(jnp.allclose(logp_c, logp_c_ref, atol=5e-2))
    assert bool(jnp.allclose(hidden_c, hidden_c_ref, atol=5e-2))

    # ---- Per-gate-128 fallback layout (3H > 128) with a larger hidden size.
    HID2 = 64
    raw2 = init_params(k_param2, VOCAB, EMB, HID2)
    params2 = prepare_params(raw2)
    logp2, hidden2 = gru_forward(seq, params2)
    jax.block_until_ready((logp2, hidden2))
    logp2_ref, hidden2_ref = gru_reference(seq, raw2)
    assert bool(jnp.allclose(logp2, logp2_ref, atol=5e-2))
    assert bool(jnp.allclose(hidden2, hidden2_ref, atol=5e-2))

    print("KERNEL_OK")
</pallas_src>

<mosaic_0001>
module attributes {stable_mosaic.version = 11 : i64} {
  func.func @gru_kernel(%arg0: i32, %arg1: memref<64x16xf32, #tpu.memory_space<vmem>>, %arg2: memref<16x128xf32, #tpu.memory_space<vmem>>, %arg3: memref<128x128xf32, #tpu.memory_space<vmem>>, %arg4: memref<1x128xf32, #tpu.memory_space<vmem>>, %arg5: memref<1x128xf32, #tpu.memory_space<vmem>>, %arg6: memref<8x128xf32, #tpu.memory_space<vmem>>, %arg7: memref<8x128xf32, #tpu.memory_space<vmem>>, %arg8: memref<64x128xf32, #tpu.memory_space<vmem>>) attributes {dimension_semantics = [#tpu.dimension_semantics<arbitrary>], iteration_bounds = array<i64: 1>, scalar_prefetch = 0 : i64, scratch_operands = 2 : i64, tpu.core_type = #tpu.core_type<tc>, window_params = [{transform_indices = @transform_0, window_bounds = array<i64: 64, 16>}, {pipeline_mode = #tpu.pipeline_mode<synchronous>, transform_indices = @transform_1, window_bounds = array<i64: 16, 128>}, {pipeline_mode = #tpu.pipeline_mode<synchronous>, transform_indices = @transform_2, window_bounds = array<i64: 128, 128>}, {pipeline_mode = #tpu.pipeline_mode<synchronous>, transform_indices = @transform_3, window_bounds = array<i64: 1, 128>}, {pipeline_mode = #tpu.pipeline_mode<synchronous>, transform_indices = @transform_4, window_bounds = array<i64: 1, 128>}, {pipeline_mode = #tpu.pipeline_mode<synchronous>, transform_indices = @transform_5, window_bounds = array<i64: 8, 128>}]} {
    %c0_i32 = arith.constant 0 : i32
    %0 = arith.cmpi eq, %arg0, %c0_i32 : i32
    %1 = arith.extui %0 : i1 to i32
    %c0_i32_0 = arith.constant 0 : i32
    %2 = arith.cmpi ne, %1, %c0_i32_0 : i32
    scf.if %2 {
      %cst_73 = arith.constant 0.000000e+00 : f32
      %201 = vector.broadcast %cst_73 : f32 to vector<8x128xf32>
      %c0_74 = arith.constant 0 : index
      %c0_75 = arith.constant 0 : index
      %202 = vector.load %arg7[%c0_74, %c0_75] : memref<8x128xf32, #tpu.memory_space<vmem>>, vector<8x128xf32>
      tpu.vector_store %arg7[%c0_74, %c0_75], %201 {strides = array<i32>} : memref<8x128xf32, #tpu.memory_space<vmem>>, vector<8x128xf32>,
    } else {
    }
    %c0 = arith.constant 0 : index
    %c0_1 = arith.constant 0 : index
    %3 = vector.load %arg1[%c0, %c0_1] : memref<64x16xf32, #tpu.memory_space<vmem>>, vector<64x16xf32>
    %c0_2 = arith.constant 0 : index
    %c0_3 = arith.constant 0 : index
    %4 = vector.load %arg2[%c0_2, %c0_3] : memref<16x128xf32, #tpu.memory_space<vmem>>, vector<16x128xf32>
    %cst = arith.constant dense<0.000000e+00> : vector<64x128xf32>
    %5 = tpu.matmul %3, %4, %cst {dimension_numbers = #tpu.dot_dimension_numbers<[1], [0], [0], [1], [0, 0, 1, 1], [], []>} : vector<64x16xf32>, vector<16x128xf32>, vector<64x128xf32> -> vector<64x128xf32>
    %c0_4 = arith.constant 0 : index
    %c0_5 = arith.constant 0 : index
    %6 = vector.load %arg4[%c0_4, %c0_5] : memref<1x128xf32, #tpu.memory_space<vmem>>, vector<1x128xf32>
    %7 = vector.broadcast %6 : vector<1x128xf32> to vector<64x128xf32>
    %8 = arith.addf %5, %7 : vector<64x128xf32>
    %c0_6 = arith.constant 0 : index
    %c0_7 = arith.constant 0 : index
    %9 = vector.load %arg8[%c0_6, %c0_7] : memref<64x128xf32, #tpu.memory_space<vmem>>, vector<64x128xf32>
    tpu.vector_store %arg8[%c0_6, %c0_7], %8 {strides = array<i32>} : memref<64x128xf32, #tpu.memory_space<vmem>>, vector<64x128xf32>,
    %c0_8 = arith.constant 0 : index
    %c0_9 = arith.constant 0 : index
    %10 = vector.load %arg3[%c0_8, %c0_9] : memref<128x128xf32, #tpu.memory_space<vmem>>, vector<128x128xf32>
    %c0_10 = arith.constant 0 : index
    %c0_11 = arith.constant 0 : index
    %11 = vector.load %arg5[%c0_10, %c0_11] : memref<1x128xf32, #tpu.memory_space<vmem>>, vector<1x128xf32>
    %c0_12 = arith.constant 0 : index
    %c0_13 = arith.constant 0 : index
    %12 = vector.load %arg7[%c0_12, %c0_13] : memref<8x128xf32, #tpu.memory_space<vmem>>, vector<8x128xf32>
    %c0_i32_14 = arith.constant 0 : i32
    %c8_i32 = arith.constant 8 : i32
    %13 = arith.muli %c0_i32_14, %c8_i32 : i32
    %14 = tpu.assume_multiple %13, 8 : i32
    %15 = arith.index_cast %14 : i32 to index
    %c0_15 = arith.constant 0 : index
    %16 = vector.load %arg8[%15, %c0_15] : memref<64x128xf32, #tpu.memory_space<vmem>>, vector<8x128xf32>
    %cst_16 = arith.constant dense<0.000000e+00> : vector<8x128xf32>
    %17 = tpu.matmul %12, %10, %cst_16 {dimension_numbers = #tpu.dot_dimension_numbers<[1], [0], [0], [1], [0, 0, 1, 1], [], []>} : vector<8x128xf32>, vector<128x128xf32>, vector<8x128xf32> -> vector<8x128xf32>
    %18 = vector.broadcast %11 : vector<1x128xf32> to vector<8x128xf32>
    %19 = arith.addf %17, %18 : vector<8x128xf32>
    %20 = arith.addf %16, %19 : vector<8x128xf32>
    %21 = arith.negf %20 : vector<8x128xf32>
    %22 = math.exp %21 : vector<8x128xf32>
    %cst_17 = arith.constant 1.000000e+00 : f32
    %23 = vector.broadcast %cst_17 : f32 to vector<8x128xf32>
    %24 = arith.addf %23, %22 : vector<8x128xf32>
    %25 = arith.divf %23, %24 : vector<8x128xf32>
    %c64_i32 = arith.constant 64 : i32
    %26 = tpu.dynamic_rotate %25 by %c64_i32 dim 1 : vector<8x128xf32>, i32 -> vector<8x128xf32>
    %c32_i32 = arith.constant 32 : i32
    %27 = tpu.dynamic_rotate %25 by %c32_i32 dim 1 : vector<8x128xf32>, i32 -> vector<8x128xf32>
    %28 = arith.mulf %26, %19 : vector<8x128xf32>
    %29 = arith.addf %16, %28 : vector<8x128xf32>
    %30 = math.tanh %29 : vector<8x128xf32>
    %cst_18 = arith.constant 1.000000e+00 : f32
    %31 = vector.broadcast %cst_18 : f32 to vector<8x128xf32>
    %32 = arith.subf %31, %27 : vector<8x128xf32>
    %33 = arith.mulf %32, %30 : vector<8x128xf32>
    %34 = arith.mulf %27, %12 : vector<8x128xf32>
    %35 = arith.addf %33, %34 : vector<8x128xf32>
    %c1_i32 = arith.constant 1 : i32
    %c8_i32_19 = arith.constant 8 : i32
    %36 = arith.muli %c1_i32, %c8_i32_19 : i32
    %37 = tpu.assume_multiple %36, 8 : i32
    %38 = arith.index_cast %37 : i32 to index
    %c0_20 = arith.constant 0 : index
    %39 = vector.load %arg8[%38, %c0_20] : memref<64x128xf32, #tpu.memory_space<vmem>>, vector<8x128xf32>
    %cst_21 = arith.constant dense<0.000000e+00> : vector<8x128xf32>
    %40 = tpu.matmul %35, %10, %cst_21 {dimension_numbers = #tpu.dot_dimension_numbers<[1], [0], [0], [1], [0, 0, 1, 1], [], []>} : vector<8x128xf32>, vector<128x128xf32>, vector<8x128xf32> -> vector<8x128xf32>
    %41 = vector.broadcast %11 : vector<1x128xf32> to vector<8x128xf32>
    %42 = arith.addf %40, %41 : vector<8x128xf32>
    %43 = arith.addf %39, %42 : vector<8x128xf32>
    %44 = arith.negf %43 : vector<8x128xf32>
    %45 = math.exp %44 : vector<8x128xf32>
    %cst_22 = arith.constant 1.000000e+00 : f32
    %46 = vector.broadcast %cst_22 : f32 to vector<8x128xf32>
    %47 = arith.addf %46, %45 : vector<8x128xf32>
    %48 = arith.divf %46, %47 : vector<8x128xf32>
    %c64_i32_23 = arith.constant 64 : i32
    %49 = tpu.dynamic_rotate %48 by %c64_i32_23 dim 1 : vector<8x128xf32>, i32 -> vector<8x128xf32>
    %c32_i32_24 = arith.constant 32 : i32
    %50 = tpu.dynamic_rotate %48 by %c32_i32_24 dim 1 : vector<8x128xf32>, i32 -> vector<8x128xf32>
    %51 = arith.mulf %49, %42 : vector<8x128xf32>
    %52 = arith.addf %39, %51 : vector<8x128xf32>
    %53 = math.tanh %52 : vector<8x128xf32>
    %cst_25 = arith.constant 1.000000e+00 : f32
    %54 = vector.broadcast %cst_25 : f32 to vector<8x128xf32>
    %55 = arith.subf %54, %50 : vector<8x128xf32>
    %56 = arith.mulf %55, %53 : vector<8x128xf32>
    %57 = arith.mulf %50, %35 : vector<8x128xf32>
    %58 = arith.addf %56, %57 : vector<8x128xf32>
    %c2_i32 = arith.constant 2 : i32
    %c8_i32_26 = arith.constant 8 : i32
    %59 = arith.muli %c2_i32, %c8_i32_26 : i32
    %60 = tpu.assume_multiple %59, 8 : i32
    %61 = arith.index_cast %60 : i32 to index
    %c0_27 = arith.constant 0 : index
    %62 = vector.load %arg8[%61, %c0_27] : memref<64x128xf32, #tpu.memory_space<vmem>>, vector<8x128xf32>
    %cst_28 = arith.constant dense<0.000000e+00> : vector<8x128xf32>
    %63 = tpu.matmul %58, %10, %cst_28 {dimension_numbers = #tpu.dot_dimension_numbers<[1], [0], [0], [1], [0, 0, 1, 1], [], []>} : vector<8x128xf32>, vector<128x128xf32>, vector<8x128xf32> -> vector<8x128xf32>
    %64 = vector.broadcast %11 : vector<1x128xf32> to vector<8x128xf32>
    %65 = arith.addf %63, %64 : vector<8x128xf32>
    %66 = arith.addf %62, %65 : vector<8x128xf32>
    %67 = arith.negf %66 : vector<8x128xf32>
    %68 = math.exp %67 : vector<8x128xf32>
    %cst_29 = arith.constant 1.000000e+00 : f32
    %69 = vector.broadcast %cst_29 : f32 to vector<8x128xf32>
    %70 = arith.addf %69, %68 : vector<8x128xf32>
    %71 = arith.divf %69, %70 : vector<8x128xf32>
    %c64_i32_30 = arith.constant 64 : i32
    %72 = tpu.dynamic_rotate %71 by %c64_i32_30 dim 1 : vector<8x128xf32>, i32 -> vector<8x128xf32>
    %c32_i32_31 = arith.constant 32 : i32
    %73 = tpu.dynamic_rotate %71 by %c32_i32_31 dim 1 : vector<8x128xf32>, i32 -> vector<8x128xf32>
    %74 = arith.mulf %72, %65 : vector<8x128xf32>
    %75 = arith.addf %62, %74 : vector<8x128xf32>
    %76 = math.tanh %75 : vector<8x128xf32>
    %cst_32 = arith.constant 1.000000e+00 : f32
    %77 = vector.broadcast %cst_32 : f32 to vector<8x128xf32>
    %78 = arith.subf %77, %73 : vector<8x128xf32>
    %79 = arith.mulf %78, %76 : vector<8x128xf32>
    %80 = arith.mulf %73, %58 : vector<8x128xf32>
    %81 = arith.addf %79, %80 : vector<8x128xf32>
    %c3_i32 = arith.constant 3 : i32
    %c8_i32_33 = arith.constant 8 : i32
    %82 = arith.muli %c3_i32, %c8_i32_33 : i32
    %83 = tpu.assume_multiple %82, 8 : i32
    %84 = arith.index_cast %83 : i32 to index
    %c0_34 = arith.constant 0 : index
    %85 = vector.load %arg8[%84, %c0_34] : memref<64x128xf32, #tpu.memory_space<vmem>>, vector<8x128xf32>
    %cst_35 = arith.constant dense<0.000000e+00> : vector<8x128xf32>
    %86 = tpu.matmul %81, %10, %cst_35 {dimension_numbers = #tpu.dot_dimension_numbers<[1], [0], [0], [1], [0, 0, 1, 1], [], []>} : vector<8x128xf32>, vector<128x128xf32>, vector<8x128xf32> -> vector<8x128xf32>
    %87 = vector.broadcast %11 : vector<1x128xf32> to vector<8x128xf32>
    %88 = arith.addf %86, %87 : vector<8x128xf32>
    %89 = arith.addf %85, %88 : vector<8x128xf32>
    %90 = arith.negf %89 : vector<8x128xf32>
    %91 = math.exp %90 : vector<8x128xf32>
    %cst_36 = arith.constant 1.000000e+00 : f32
    %92 = vector.broadcast %cst_36 : f32 to vector<8x128xf32>
    %93 = arith.addf %92, %91 : vector<8x128xf32>
    %94 = arith.divf %92, %93 : vector<8x128xf32>
    %c64_i32_37 = arith.constant 64 : i32
    %95 = tpu.dynamic_rotate %94 by %c64_i32_37 dim 1 : vector<8x128xf32>, i32 -> vector<8x128xf32>
    %c32_i32_38 = arith.constant 32 : i32
    %96 = tpu.dynamic_rotate %94 by %c32_i32_38 dim 1 : vector<8x128xf32>, i32 -> vector<8x128xf32>
    %97 = arith.mulf %95, %88 : vector<8x128xf32>
    %98 = arith.addf %85, %97 : vector<8x128xf32>
    %99 = math.tanh %98 : vector<8x128xf32>
    %cst_39 = arith.constant 1.000000e+00 : f32
    %100 = vector.broadcast %cst_39 : f32 to vector<8x128xf32>
    %101 = arith.subf %100, %96 : vector<8x128xf32>
    %102 = arith.mulf %101, %99 : vector<8x128xf32>
    %103 = arith.mulf %96, %81 : vector<8x128xf32>
    %104 = arith.addf %102, %103 : vector<8x128xf32>
    %c4_i32 = arith.constant 4 : i32
    %c8_i32_40 = arith.constant 8 : i32
    %105 = arith.muli %c4_i32, %c8_i32_40 : i32
    %106 = tpu.assume_multiple %105, 8 : i32
    %107 = arith.index_cast %106 : i32 to index
    %c0_41 = arith.constant 0 : index
    %108 = vector.load %arg8[%107, %c0_41] : memref<64x128xf32, #tpu.memory_space<vmem>>, vector<8x128xf32>
    %cst_42 = arith.constant dense<0.000000e+00> : vector<8x128xf32>
    %109 = tpu.matmul %104, %10, %cst_42 {dimension_numbers = #tpu.dot_dimension_numbers<[1], [0], [0], [1], [0, 0, 1, 1], [], []>} : vector<8x128xf32>, vector<128x128xf32>, vector<8x128xf32> -> vector<8x128xf32>
    %110 = vector.broadcast %11 : vector<1x128xf32> to vector<8x128xf32>
    %111 = arith.addf %109, %110 : vector<8x128xf32>
    %112 = arith.addf %108, %111 : vector<8x128xf32>
    %113 = arith.negf %112 : vector<8x128xf32>
    %114 = math.exp %113 : vector<8x128xf32>
    %cst_43 = arith.constant 1.000000e+00 : f32
    %115 = vector.broadcast %cst_43 : f32 to vector<8x128xf32>
    %116 = arith.addf %115, %114 : vector<8x128xf32>
    %117 = arith.divf %115, %116 : vector<8x128xf32>
    %c64_i32_44 = arith.constant 64 : i32
    %118 = tpu.dynamic_rotate %117 by %c64_i32_44 dim 1 : vector<8x128xf32>, i32 -> vector<8x128xf32>
    %c32_i32_45 = arith.constant 32 : i32
    %119 = tpu.dynamic_rotate %117 by %c32_i32_45 dim 1 : vector<8x128xf32>, i32 -> vector<8x128xf32>
    %120 = arith.mulf %118, %111 : vector<8x128xf32>
    %121 = arith.addf %108, %120 : vector<8x128xf32>
    %122 = math.tanh %121 : vector<8x128xf32>
    %cst_46 = arith.constant 1.000000e+00 : f32
    %123 = vector.broadcast %cst_46 : f32 to vector<8x128xf32>
    %124 = arith.subf %123, %119 : vector<8x128xf32>
    %125 = arith.mulf %124, %122 : vector<8x128xf32>
    %126 = arith.mulf %119, %104 : vector<8x128xf32>
    %127 = arith.addf %125, %126 : vector<8x128xf32>
    %c5_i32 = arith.constant 5 : i32
    %c8_i32_47 = arith.constant 8 : i32
    %128 = arith.muli %c5_i32, %c8_i32_47 : i32
    %129 = tpu.assume_multiple %128, 8 : i32
    %130 = arith.index_cast %129 : i32 to index
    %c0_48 = arith.constant 0 : index
    %131 = vector.load %arg8[%130, %c0_48] : memref<64x128xf32, #tpu.memory_space<vmem>>, vector<8x128xf32>
    %cst_49 = arith.constant dense<0.000000e+00> : vector<8x128xf32>
    %132 = tpu.matmul %127, %10, %cst_49 {dimension_numbers = #tpu.dot_dimension_numbers<[1], [0], [0], [1], [0, 0, 1, 1], [], []>} : vector<8x128xf32>, vector<128x128xf32>, vector<8x128xf32> -> vector<8x128xf32>
    %133 = vector.broadcast %11 : vector<1x128xf32> to vector<8x128xf32>
    %134 = arith.addf %132, %133 : vector<8x128xf32>
    %135 = arith.addf %131, %134 : vector<8x128xf32>
    %136 = arith.negf %135 : vector<8x128xf32>
    %137 = math.exp %136 : vector<8x128xf32>
    %cst_50 = arith.constant 1.000000e+00 : f32
    %138 = vector.broadcast %cst_50 : f32 to vector<8x128xf32>
    %139 = arith.addf %138, %137 : vector<8x128xf32>
    %140 = arith.divf %138, %139 : vector<8x128xf32>
    %c64_i32_51 = arith.constant 64 : i32
    %141 = tpu.dynamic_rotate %140 by %c64_i32_51 dim 1 : vector<8x128xf32>, i32 -> vector<8x128xf32>
    %c32_i32_52 = arith.constant 32 : i32
    %142 = tpu.dynamic_rotate %140 by %c32_i32_52 dim 1 : vector<8x128xf32>, i32 -> vector<8x128xf32>
    %143 = arith.mulf %141, %134 : vector<8x128xf32>
    %144 = arith.addf %131, %143 : vector<8x128xf32>
    %145 = math.tanh %144 : vector<8x128xf32>
    %cst_53 = arith.constant 1.000000e+00 : f32
    %146 = vector.broadcast %cst_53 : f32 to vector<8x128xf32>
    %147 = arith.subf %146, %142 : vector<8x128xf32>
    %148 = arith.mulf %147, %145 : vector<8x128xf32>
    %149 = arith.mulf %142, %127 : vector<8x128xf32>
    %150 = arith.addf %148, %149 : vector<8x128xf32>
    %c6_i32 = arith.constant 6 : i32
    %c8_i32_54 = arith.constant 8 : i32
    %151 = arith.muli %c6_i32, %c8_i32_54 : i32
    %152 = tpu.assume_multiple %151, 8 : i32
    %153 = arith.index_cast %152 : i32 to index
    %c0_55 = arith.constant 0 : index
    %154 = vector.load %arg8[%153, %c0_55] : memref<64x128xf32, #tpu.memory_space<vmem>>, vector<8x128xf32>
    %cst_56 = arith.constant dense<0.000000e+00> : vector<8x128xf32>
    %155 = tpu.matmul %150, %10, %cst_56 {dimension_numbers = #tpu.dot_dimension_numbers<[1], [0], [0], [1], [0, 0, 1, 1], [], []>} : vector<8x128xf32>, vector<128x128xf32>, vector<8x128xf32> -> vector<8x128xf32>
    %156 = vector.broadcast %11 : vector<1x128xf32> to vector<8x128xf32>
    %157 = arith.addf %155, %156 : vector<8x128xf32>
    %158 = arith.addf %154, %157 : vector<8x128xf32>
    %159 = arith.negf %158 : vector<8x128xf32>
    %160 = math.exp %159 : vector<8x128xf32>
    %cst_57 = arith.constant 1.000000e+00 : f32
    %161 = vector.broadcast %cst_57 : f32 to vector<8x128xf32>
    %162 = arith.addf %161, %160 : vector<8x128xf32>
    %163 = arith.divf %161, %162 : vector<8x128xf32>
    %c64_i32_58 = arith.constant 64 : i32
    %164 = tpu.dynamic_rotate %163 by %c64_i32_58 dim 1 : vector<8x128xf32>, i32 -> vector<8x128xf32>
    %c32_i32_59 = arith.constant 32 : i32
    %165 = tpu.dynamic_rotate %163 by %c32_i32_59 dim 1 : vector<8x128xf32>, i32 -> vector<8x128xf32>
    %166 = arith.mulf %164, %157 : vector<8x128xf32>
    %167 = arith.addf %154, %166 : vector<8x128xf32>
    %168 = math.tanh %167 : vector<8x128xf32>
    %cst_60 = arith.constant 1.000000e+00 : f32
    %169 = vector.broadcast %cst_60 : f32 to vector<8x128xf32>
    %170 = arith.subf %169, %165 : vector<8x128xf32>
    %171 = arith.mulf %170, %168 : vector<8x128xf32>
    %172 = arith.mulf %165, %150 : vector<8x128xf32>
    %173 = arith.addf %171, %172 : vector<8x128xf32>
    %c7_i32 = arith.constant 7 : i32
    %c8_i32_61 = arith.constant 8 : i32
    %174 = arith.muli %c7_i32, %c8_i32_61 : i32
    %175 = tpu.assume_multiple %174, 8 : i32
    %176 = arith.index_cast %175 : i32 to index
    %c0_62 = arith.constant 0 : index
    %177 = vector.load %arg8[%176, %c0_62] : memref<64x128xf32, #tpu.memory_space<vmem>>, vector<8x128xf32>
    %cst_63 = arith.constant dense<0.000000e+00> : vector<8x128xf32>
    %178 = tpu.matmul %173, %10, %cst_63 {dimension_numbers = #tpu.dot_dimension_numbers<[1], [0], [0], [1], [0, 0, 1, 1], [], []>} : vector<8x128xf32>, vector<128x128xf32>, vector<8x128xf32> -> vector<8x128xf32>
    %179 = vector.broadcast %11 : vector<1x128xf32> to vector<8x128xf32>
    %180 = arith.addf %178, %179 : vector<8x128xf32>
    %181 = arith.addf %177, %180 : vector<8x128xf32>
    %182 = arith.negf %181 : vector<8x128xf32>
    %183 = math.exp %182 : vector<8x128xf32>
    %cst_64 = arith.constant 1.000000e+00 : f32
    %184 = vector.broadcast %cst_64 : f32 to vector<8x128xf32>
    %185 = arith.addf %184, %183 : vector<8x128xf32>
    %186 = arith.divf %184, %185 : vector<8x128xf32>
    %c64_i32_65 = arith.constant 64 : i32
    %187 = tpu.dynamic_rotate %186 by %c64_i32_65 dim 1 : vector<8x128xf32>, i32 -> vector<8x128xf32>
    %c32_i32_66 = arith.constant 32 : i32
    %188 = tpu.dynamic_rotate %186 by %c32_i32_66 dim 1 : vector<8x128xf32>, i32 -> vector<8x128xf32>
    %189 = arith.mulf %187, %180 : vector<8x128xf32>
    %190 = arith.addf %177, %189 : vector<8x128xf32>
    %191 = math.tanh %190 : vector<8x128xf32>
    %cst_67 = arith.constant 1.000000e+00 : f32
    %192 = vector.broadcast %cst_67 : f32 to vector<8x128xf32>
    %193 = arith.subf %192, %188 : vector<8x128xf32>
    %194 = arith.mulf %193, %191 : vector<8x128xf32>
    %195 = arith.mulf %188, %173 : vector<8x128xf32>
    %196 = arith.addf %194, %195 : vector<8x128xf32>
    %c8_i32_68 = arith.constant 8 : i32
    %c0_69 = arith.constant 0 : index
    %c0_70 = arith.constant 0 : index
    %197 = vector.load %arg7[%c0_69, %c0_70] : memref<8x128xf32, #tpu.memory_space<vmem>>, vector<8x128xf32>
    tpu.vector_store %arg7[%c0_69, %c0_70], %196 {strides = array<i32>} : memref<8x128xf32, #tpu.memory_space<vmem>>, vector<8x128xf32>,
    %c0_i32_71 = arith.constant 0 : i32
    %198 = arith.cmpi eq, %arg0, %c0_i32_71 : i32
    %199 = arith.extui %198 : i1 to i32
    %c0_i32_72 = arith.constant 0 : i32
    %200 = arith.cmpi ne, %199, %c0_i32_72 : i32
    scf.if %200 {
      %c0_73 = arith.constant 0 : index
      %c0_74 = arith.constant 0 : index
      %201 = vector.load %arg6[%c0_73, %c0_74] : memref<8x128xf32, #tpu.memory_space<vmem>>, vector<8x128xf32>
      tpu.vector_store %arg6[%c0_73, %c0_74], %196 {strides = array<i32>} : memref<8x128xf32, #tpu.memory_space<vmem>>, vector<8x128xf32>,
    } else {
    }
    return
  }
  func.func @transform_0(%arg0: i32) -> (i32, i32) {
    %c0_i32 = arith.constant 0 : i32
    %c0_i32_0 = arith.constant 0 : i32
    return %arg0, %c0_i32 : i32, i32
  }
  func.func @transform_1(%arg0: i32) -> (i32, i32) {
    %c0_i32 = arith.constant 0 : i32
    %c0_i32_0 = arith.constant 0 : i32
    %c0_i32_1 = arith.constant 0 : i32
    return %c0_i32, %c0_i32_0 : i32, i32
  }
  func.func @transform_2(%arg0: i32) -> (i32, i32) {
    %c0_i32 = arith.constant 0 : i32
    %c0_i32_0 = arith.constant 0 : i32
    %c0_i32_1 = arith.constant 0 : i32
    return %c0_i32, %c0_i32_0 : i32, i32
  }
  func.func @transform_3(%arg0: i32) -> (i32, i32) {
    %c0_i32 = arith.constant 0 : i32
    %c0_i32_0 = arith.constant 0 : i32
    %c0_i32_1 = arith.constant 0 : i32
    return %c0_i32, %c0_i32_0 : i32, i32
  }
  func.func @transform_4(%arg0: i32) -> (i32, i32) {
    %c0_i32 = arith.constant 0 : i32
    %c0_i32_0 = arith.constant 0 : i32
    %c0_i32_1 = arith.constant 0 : i32
    return %c0_i32, %c0_i32_0 : i32, i32
  }
  func.func @transform_5(%arg0: i32) -> (i32, i32) {
    %c0_i32 = arith.constant 0 : i32
    %c0_i32_0 = arith.constant 0 : i32
    %c0_i32_1 = arith.constant 0 : i32
    return %c0_i32, %c0_i32_0 : i32, i32
  }
}

</mosaic_0001>

<llo_original>
// kernel: tpu_custom_call.1
$region0: #{tpu_custom_call.1}
  #allocation0 [shape = 'u32[]', space=smem, size = 0x4, offset = 0x4, fixed_abs, tag = 'smem constant byte address 0x4 - core index']
  #allocation1 [shape = 'u32[144,128]{1,0:T(1,128)}', space=vmem, size = 0x12000, scoped, tag = 'internal scratch']
  #allocation2 [shape = 'f32[8,128]{1,0:T(8,128)}', space=vmem, size = 0x1000, scoped, tag = 'scratch operand']
  #allocation3 [shape = 'f32[64,128]{1,0:T(8,128)}', space=vmem, size = 0x8000, scoped, tag = 'scratch operand']
  %s0 = inlined_call_operand.vmem [shape: f32[64,16], index: 0, kind: input, shape index: {}]
  %s1 = inlined_call_operand.vmem [shape: f32[16,128], index: 1, kind: input, shape index: {}]
  %s2 = inlined_call_operand.hbm [shape: f32[128,128], index: 2, kind: input, shape index: {}]
  %s3 = inlined_call_operand.vmem [shape: f32[1,128], index: 3, kind: input, shape index: {}]
  %s4 = inlined_call_operand.vmem [shape: f32[1,128], index: 4, kind: input, shape index: {}]
  %s5 = inlined_call_operand.hbm [shape: f32[8,128], index: 5, kind: output, shape index: {}]
  %s6 = sld [smem:[#allocation0]]
  $region42: #{tpu_custom_call.1} parent=0
    _
  %s8 = ssub.s32 1, %s6
  %s9 = scalar_select 0, %s8, %s6
  $region1: #{tpu_custom_call.1} parent=0
    #allocation4 [shape = 'u8[65536]{0}', space=vmem, size = 0x10000, scoped, tag = 'input window, operand 2, single buffered']
    #allocation5 [shape = 's32[1]{0}', space=sflag, size = 0x4, scoped, tag = 'scoped memory for tpu_custom_call.1']
    #allocation6 [shape = 's32[1]{0}', space=sflag, size = 0x4, scoped, tag = 'scoped memory for tpu_custom_call.1']
    #allocation7 [shape = 'u8[4096]{0}', space=vmem, size = 0x1000, scoped, tag = 'output window, operand 0, single buffered']
    %10 = vsyncpa [#allocation5], 0
    %11 = vsyncpa [#allocation6], 0
    // Predicated region
    $region2: #{tpu_custom_call.1} parent=1 // pred_check
      _
    $region3: #{tpu_custom_call.1} parent=1 // pred_check_branch
      %13 = sbr.rel (0) target = $region5
    $region4: #{tpu_custom_call.1} parent=1 // pred_region
      _
    $region5: #{tpu_custom_call.1} parent=1 // pred_fallthru
      _
    // Predicated region
    $region6: #{tpu_custom_call.1} parent=1 // pred_check
      _
    $region7: #{tpu_custom_call.1} parent=1 // pred_check_branch
      %15 = sbr.rel (0) target = $region9
    $region8: #{tpu_custom_call.1} parent=1 // pred_region
      _
    $region9: #{tpu_custom_call.1} parent=1 // pred_fallthru
      _
    // Predicated region
    $region10: #{tpu_custom_call.1} parent=1 // pred_check
      _
    $region11: #{tpu_custom_call.1} parent=1 // pred_check_branch
      %17 = sbr.rel (0) target = $region13
    $region12: #{tpu_custom_call.1} parent=1 // pred_region
      %s19 = ssub.s32 2048, 2048
      %20 = vsyncadd [#allocation5], %s19
      %s21 = sshll.u32 [#allocation4], 4
      %s22 = int_to_ptr.vmem [resolvable:$true] %s21
      %27 = dma.hbm_to_vmem [thread:$0]  %s2, 2048, %s22, [#allocation5], 128, 128, 8
    $region13: #{tpu_custom_call.1} parent=1 // pred_fallthru
      _
    // Predicated region
    $region14: #{tpu_custom_call.1} parent=1 // pred_check
      _
    $region15: #{tpu_custom_call.1} parent=1 // pred_check_branch
      %29 = sbr.rel (0) target = $region17
    $region16: #{tpu_custom_call.1} parent=1 // pred_region
      _
    $region17: #{tpu_custom_call.1} parent=1 // pred_fallthru
      _
    // Predicated region
    $region18: #{tpu_custom_call.1} parent=1 // pred_check
      _
    $region19: #{tpu_custom_call.1} parent=1 // pred_check_branch
      %31 = sbr.rel (0) target = $region21
    $region20: #{tpu_custom_call.1} parent=1 // pred_region
      _
    $region21: #{tpu_custom_call.1} parent=1 // pred_fallthru
      _
    // Predicated region
    $region22: #{tpu_custom_call.1} parent=1 // pred_check
      _
    $region23: #{tpu_custom_call.1} parent=1 // pred_check_branch
      %33 = sbr.rel (0) target = $region25
    $region24: #{tpu_custom_call.1} parent=1 // pred_region
      %34 = dma.done [#allocation5], 2048
    $region25: #{tpu_custom_call.1} parent=1 // pred_fallthru
      _
    %p35 = scmp.eq.s32.totalorder 0, 0
    // Predicated region
    $region26: #{tpu_custom_call.1} parent=1 // pred_check
      %p36 = pneg %p35
    $region27: #{tpu_custom_call.1} parent=1 // pred_check_branch
      %38 = sbr.rel (%p36) target = $region29
    $region28: #{tpu_custom_call.1} parent=1 // pred_region
      %39 = vst [vmem:[#allocation2] sm:$0xff] 0.0
    $region29: #{tpu_custom_call.1} parent=1 // pred_fallthru
      _
    %v40 = vld [vmem:[%s0] sm:$0xff]
    %v41 = vld [vmem:[%s0 + $0x8] sm:$0xff]
    %v42 = vld [vmem:[%s0 + $0x10] sm:$0xff]
    %v43 = vld [vmem:[%s0 + $0x18] sm:$0xff]
    %v44 = vld [vmem:[%s0 + $0x20] sm:$0xff]
    %v45 = vld [vmem:[%s0 + $0x28] sm:$0xff]
    %v46 = vld [vmem:[%s0 + $0x30] sm:$0xff]
    %v47 = vld [vmem:[%s0 + $0x38] sm:$0xff]
    %v48 = vld [vmem:[%s1] sm:$0xff]
    %v49 = vld [vmem:[%s1 + $0x8] sm:$0xff]
    %v50 = vld [vmem:[%s3] sm:$0x1]
    %v52 = vlaneseq
    %v53 = vshrl.u32 %v52, 7
    %v54 = vsub.s32 0, %v53
    %v55 = vrot.slane %v50, %v54
    %vm57 = vcmask 130048
    %v59 = vsel %vm57, %v40, 0
    %v62 = vsel %vm57, %v41, 0
    %v65 = vsel %vm57, %v42, 0
    %v68 = vsel %vm57, %v43, 0
    %v71 = vsel %vm57, %v44, 0
    %v74 = vsel %vm57, %v45, 0
    %v77 = vsel %vm57, %v46, 0
    %v80 = vsel %vm57, %v47, 0
    %82 = vmatprep.subr.mxu0 0.0
    %83 = vmatpush1.msra.mxu0 %v48
    %84 = vmatprep.subr.mxu0 0.0
    %85 = vmatpush1.msra.mxu0 %v49
    %86 = vmatprep.subr.mxu0 0.0
    %87 = vmatpush1.msra.mxu0 0.0
    %88 = vmatprep.subr.mxu0 0.0
    %89 = vmatpush1.msra.mxu0 0.0
    %90 = vmatprep.subr.mxu0 0.0
    %91 = vmatpush1.msra.mxu0 0.0
    %92 = vmatprep.subr.mxu0 0.0
    %93 = vmatpush1.msra.mxu0 0.0
    %94 = vmatprep.subr.mxu0 0.0
    %95 = vmatpush1.msra.mxu0 0.0
    %96 = vmatprep.subr.mxu0 0.0
    %97 = vmatpush1.msra.mxu0 0.0
    %98 = vmatprep.subr.mxu0 0.0
    %99 = vmatpush1.msra.mxu0 0.0
    %100 = vmatprep.subr.mxu0 0.0
    %101 = vmatpush1.msra.mxu0 0.0
    %102 = vmatprep.subr.mxu0 0.0
    %103 = vmatpush1.msra.mxu0 0.0
    %104 = vmatprep.subr.mxu0 0.0
    %105 = vmatpush1.msra.mxu0 0.0
    %106 = vmatprep.subr.mxu0 0.0
    %107 = vmatpush1.msra.mxu0 0.0
    %108 = vmatprep.subr.mxu0 0.0
    %109 = vmatpush1.msra.mxu0 0.0
    %110 = vmatprep.subr.mxu0 0.0
    %111 = vmatpush1.msra.mxu0 0.0
    %112 = vmatprep.subr.mxu0 0.0
    %113 = vmatpush1.msra.mxu0 0.0
    %114 = vmatprep.subr.mxu0 0.0
    %115 = vmatpush1.msra.mxu0 0.0
    %116 = vmatprep.subr.mxu0 0.0
    %117 = vmatpush1.msra.mxu0 0.0
    %118 = vmatprep.subr.mxu0 0.0
    %119 = vmatpush1.msra.mxu0 0.0
    %120 = vmatprep.subr.mxu0 0.0
    %121 = vmatpush1.msra.mxu0 0.0
    %122 = vmatprep.subr.mxu0 0.0
    %123 = vmatpush1.msra.mxu0 0.0
    %124 = vmatprep.subr.mxu0 0.0
    %125 = vmatpush1.msra.mxu0 0.0
    %126 = vmatprep.subr.mxu0 0.0
    %127 = vmatpush1.msra.mxu0 0.0
    %128 = vmatprep.subr.mxu0 0.0
    %129 = vmatpush1.msra.mxu0 0.0
    %130 = vmatprep.subr.mxu0 0.0
    %131 = vmatpush1.msra.mxu0 0.0
    %132 = vmatprep.subr.mxu0 0.0
    %133 = vmatpush1.msra.mxu0 0.0
    %134 = vmatprep.subr.mxu0 0.0
    %135 = vmatpush1.msra.mxu0 0.0
    %136 = vmatprep.subr.mxu0 0.0
    %137 = vmatpush1.msra.mxu0 0.0
    %138 = vmatprep.subr.mxu0 0.0
    %139 = vmatpush1.msra.mxu0 0.0
    %140 = vmatprep.subr.mxu0 0.0
    %141 = vmatpush1.msra.mxu0 0.0
    %142 = vmatprep.subr.mxu0 0.0
    %143 = vmatpush1.msra.mxu0 0.0
    %144 = vmatprep.subr.mxu0 0.0
    %145 = vmatpush1.msra.mxu0 0.0
    %146 = vmatprep.mubr.f32.mxu0 0.0
    %147 = vmatmul.mubr.f32.gmra.mrb[0].mxu0 %v59
    %v148 = vpop.f32.mrb[0].mxu0
    %v149 = vadd.f32 %v55, %v148
    %v150 = vpop.f32.mrb[0].mxu0
    %151 = vmatprep.mubr.f32.mxu0 0.0
    %152 = vmatmul.mubr.f32.gmra.mrb[0].mxu0 %v62
    %v153 = vpop.f32.mrb[0].mxu0
    %v154 = vadd.f32 %v55, %v153
    %v155 = vpop.f32.mrb[0].mxu0
    %156 = vmatprep.mubr.f32.mxu0 0.0
    %157 = vmatmul.mubr.f32.gmra.mrb[0].mxu0 %v65
    %v158 = vpop.f32.mrb[0].mxu0
    %v159 = vadd.f32 %v55, %v158
    %v160 = vpop.f32.mrb[0].mxu0
    %161 = vmatprep.mubr.f32.mxu0 0.0
    %162 = vmatmul.mubr.f32.gmra.mrb[0].mxu0 %v68
    %v163 = vpop.f32.mrb[0].mxu0
    %v164 = vadd.f32 %v55, %v163
    %v165 = vpop.f32.mrb[0].mxu0
    %166 = vmatprep.mubr.f32.mxu0 0.0
    %167 = vmatmul.mubr.f32.gmra.mrb[0].mxu0 %v71
    %v168 = vpop.f32.mrb[0].mxu0
    %v169 = vadd.f32 %v55, %v168
    %v170 = vpop.f32.mrb[0].mxu0
    %171 = vmatprep.mubr.f32.mxu0 0.0
    %172 = vmatmul.mubr.f32.gmra.mrb[0].mxu0 %v74
    %v173 = vpop.f32.mrb[0].mxu0
    %v174 = vadd.f32 %v55, %v173
    %v175 = vpop.f32.mrb[0].mxu0
    %176 = vmatprep.mubr.f32.mxu0 0.0
    %177 = vmatmul.mubr.f32.gmra.mrb[0].mxu0 %v77
    %v178 = vpop.f32.mrb[0].mxu0
    %v179 = vadd.f32 %v55, %v178
    %v180 = vpop.f32.mrb[0].mxu0
    %181 = vmatprep.mubr.f32.mxu0 0.0
    %182 = vmatmul.mubr.f32.gmra.mrb[0].mxu0 %v80
    %v183 = vpop.f32.mrb[0].mxu0
    %v184 = vadd.f32 %v55, %v183
    %v185 = vpop.f32.mrb[0].mxu0
    %186 = vdwg.mxu0
    %187 = vst [vmem:[#allocation3] sm:$0xff] %v149
    %188 = vst [vmem:[#allocation3 + $0x8] sm:$0xff] %v154
    %189 = vst [vmem:[#allocation3 + $0x10] sm:$0xff] %v159
    %190 = vst [vmem:[#allocation3 + $0x18] sm:$0xff] %v164
    %191 = vst [vmem:[#allocation3 + $0x20] sm:$0xff] %v169
    %192 = vst [vmem:[#allocation3 + $0x28] sm:$0xff] %v174
    %193 = vst [vmem:[#allocation3 + $0x30] sm:$0xff] %v179
    %194 = vst [vmem:[#allocation3 + $0x38] sm:$0xff] %v184
    %v195 = vld [vmem:[#allocation4] sm:$0xff]
    %v196 = vld [vmem:[#allocation4 + $0x8] sm:$0xff]
    %v197 = vld [vmem:[#allocation4 + $0x10] sm:$0xff]
    %v198 = vld [vmem:[#allocation4 + $0x18] sm:$0xff]
    %v199 = vld [vmem:[#allocation4 + $0x20] sm:$0xff]
    %v200 = vld [vmem:[#allocation4 + $0x28] sm:$0xff]
    %v201 = vld [vmem:[#allocation4 + $0x30] sm:$0xff]
    %v202 = vld [vmem:[#allocation4 + $0x38] sm:$0xff]
    %v203 = vld [vmem:[#allocation4 + $0x40] sm:$0xff]
    %v204 = vld [vmem:[#allocation4 + $0x48] sm:$0xff]
    %v205 = vld [vmem:[#allocation4 + $0x50] sm:$0xff]
    %v206 = vld [vmem:[#allocation4 + $0x58] sm:$0xff]
    %v207 = vld [vmem:[#allocation4 + $0x60] sm:$0xff]
    %v208 = vld [vmem:[#allocation4 + $0x68] sm:$0xff]
    %v209 = vld [vmem:[#allocation4 + $0x70] sm:$0xff]
    %v210 = vld [vmem:[#allocation4 + $0x78] sm:$0xff]
    %v211 = vld [vmem:[%s4] sm:$0x1]
    %v212 = vld [vmem:[#allocation2] sm:$0xff]
    %v213 = vld [vmem:[#allocation3] sm:$0xff]
    %v215 = vlaneseq
    %v216 = vshrl.u32 %v215, 7
    %v217 = vsub.s32 0, %v216
    %v218 = vrot.slane %v211, %v217
    %220 = vmatprep.subr.mxu0 0.0
    %221 = vmatpush1.msra.mxu0 %v195
    %222 = vmatprep.subr.mxu0 0.0
    %223 = vmatpush1.msra.mxu0 %v196
    %224 = vmatprep.subr.mxu0 0.0
    %225 = vmatpush1.msra.mxu0 %v197
    %226 = vmatprep.subr.mxu0 0.0
    %227 = vmatpush1.msra.mxu0 %v198
    %228 = vmatprep.subr.mxu0 0.0
    %229 = vmatpush1.msra.mxu0 %v199
    %230 = vmatprep.subr.mxu0 0.0
    %231 = vmatpush1.msra.mxu0 %v200
    %232 = vmatprep.subr.mxu0 0.0
    %233 = vmatpush1.msra.mxu0 %v201
    %234 = vmatprep.subr.mxu0 0.0
    %235 = vmatpush1.msra.mxu0 %v202
    %236 = vmatprep.subr.mxu0 0.0
    %237 = vmatpush1.msra.mxu0 %v203
    %238 = vmatprep.subr.mxu0 0.0
    %239 = vmatpush1.msra.mxu0 %v204
    %240 = vmatprep.subr.mxu0 0.0
    %241 = vmatpush1.msra.mxu0 %v205
    %242 = vmatprep.subr.mxu0 0.0
    %243 = vmatpush1.msra.mxu0 %v206
    %244 = vmatprep.subr.mxu0 0.0
    %245 = vmatpush1.msra.mxu0 %v207
    %246 = vmatprep.subr.mxu0 0.0
    %247 = vmatpush1.msra.mxu0 %v208
    %248 = vmatprep.subr.mxu0 0.0
    %249 = vmatpush1.msra.mxu0 %v209
    %250 = vmatprep.subr.mxu0 0.0
    %251 = vmatpush1.msra.mxu0 %v210
    %252 = vmatprep.subr.mxu0 0.0
    %253 = vmatpush1.msra.mxu0 0.0
    %254 = vmatprep.subr.mxu0 0.0
    %255 = vmatpush1.msra.mxu0 0.0
    %256 = vmatprep.subr.mxu0 0.0
    %257 = vmatpush1.msra.mxu0 0.0
    %258 = vmatprep.subr.mxu0 0.0
    %259 = vmatpush1.msra.mxu0 0.0
    %260 = vmatprep.subr.mxu0 0.0
    %261 = vmatpush1.msra.mxu0 0.0
    %262 = vmatprep.subr.mxu0 0.0
    %263 = vmatpush1.msra.mxu0 0.0
    %264 = vmatprep.subr.mxu0 0.0
    %265 = vmatpush1.msra.mxu0 0.0
    %266 = vmatprep.subr.mxu0 0.0
    %267 = vmatpush1.msra.mxu0 0.0
    %268 = vmatprep.subr.mxu0 0.0
    %269 = vmatpush1.msra.mxu0 0.0
    %270 = vmatprep.subr.mxu0 0.0
    %271 = vmatpush1.msra.mxu0 0.0
    %272 = vmatprep.subr.mxu0 0.0
    %273 = vmatpush1.msra.mxu0 0.0
    %274 = vmatprep.subr.mxu0 0.0
    %275 = vmatpush1.msra.mxu0 0.0
    %276 = vmatprep.subr.mxu0 0.0
    %277 = vmatpush1.msra.mxu0 0.0
    %278 = vmatprep.subr.mxu0 0.0
    %279 = vmatpush1.msra.mxu0 0.0
    %280 = vmatprep.subr.mxu0 0.0
    %281 = vmatpush1.msra.mxu0 0.0
    %282 = vmatprep.subr.mxu0 0.0
    %283 = vmatpush1.msra.mxu0 0.0
    %284 = vmatprep.mubr.f32.mxu0 0.0
    %285 = vmatmul.mubr.f32.gmra.mrb[0].mxu0 %v212
    %v286 = vpop.f32.mrb[0].mxu0
    %v287 = vadd.f32 %v218, %v286
    %v288 = vpop.f32.mrb[0].mxu0
    %289 = vdwg.mxu0
    %v290 = vadd.f32 %v213, %v287
    %v291 = vxor.u32 %v290, 2147483648
    %v292 = vmul.f32 %v291, 1.442695
    %v293 = vpow.pop %v292
    %v294 = vadd.f32 %v293, 1.0
    %v295 = vrcp.pop %v294
    %v296 = vmul.f32 1.0, %v295
    %297 = vrot.lane.b32.xlu0 %v296, 64
    %v298 = vpop.permute.xlu0 %297
    %299 = vrot.lane.b32.xlu0 %v296, 32
    %v300 = vpop.permute.xlu0 %299
    %v301 = vmul.f32 %v298, %v287
    %v302 = vadd.f32 %v213, %v301
    %v303 = vtanh.pop %v302
    %v304 = vsub.f32 1.0, %v300
    %v305 = vmul.f32 %v304, %v303
    %v306 = vmul.f32 %v300, %v212
    %v307 = vadd.f32 %v305, %v306
    %s308 = scalar_lea.vmem [#allocation3], 8
    %v309 = vld [vmem:[%s308] sm:$0xff]
    %310 = vmatprep.subr.mxu0 0.0
    %311 = vmatpush1.msra.mxu0 %v195
    %312 = vmatprep.subr.mxu0 0.0
    %313 = vmatpush1.msra.mxu0 %v196
    %314 = vmatprep.subr.mxu0 0.0
    %315 = vmatpush1.msra.mxu0 %v197
    %316 = vmatprep.subr.mxu0 0.0
    %317 = vmatpush1.msra.mxu0 %v198
    %318 = vmatprep.subr.mxu0 0.0
    %319 = vmatpush1.msra.mxu0 %v199
    %320 = vmatprep.subr.mxu0 0.0
    %321 = vmatpush1.msra.mxu0 %v200
    %322 = vmatprep.subr.mxu0 0.0
    %323 = vmatpush1.msra.mxu0 %v201
    %324 = vmatprep.subr.mxu0 0.0
    %325 = vmatpush1.msra.mxu0 %v202
    %326 = vmatprep.subr.mxu0 0.0
    %327 = vmatpush1.msra.mxu0 %v203
    %328 = vmatprep.subr.mxu0 0.0
    %329 = vmatpush1.msra.mxu0 %v204
    %330 = vmatprep.subr.mxu0 0.0
    %331 = vmatpush1.msra.mxu0 %v205
    %332 = vmatprep.subr.mxu0 0.0
    %333 = vmatpush1.msra.mxu0 %v206
    %334 = vmatprep.subr.mxu0 0.0
    %335 = vmatpush1.msra.mxu0 %v207
    %336 = vmatprep.subr.mxu0 0.0
    %337 = vmatpush1.msra.mxu0 %v208
    %338 = vmatprep.subr.mxu0 0.0
    %339 = vmatpush1.msra.mxu0 %v209
    %340 = vmatprep.subr.mxu0 0.0
    %341 = vmatpush1.msra.mxu0 %v210
    %342 = vmatprep.subr.mxu0 0.0
    %343 = vmatpush1.msra.mxu0 0.0
    %344 = vmatprep.subr.mxu0 0.0
    %345 = vmatpush1.msra.mxu0 0.0
    %346 = vmatprep.subr.mxu0 0.0
    %347 = vmatpush1.msra.mxu0 0.0
    %348 = vmatprep.subr.mxu0 0.0
    %349 = vmatpush1.msra.mxu0 0.0
    %350 = vmatprep.subr.mxu0 0.0
    %351 = vmatpush1.msra.mxu0 0.0
    %352 = vmatprep.subr.mxu0 0.0
    %353 = vmatpush1.msra.mxu0 0.0
    %354 = vmatprep.subr.mxu0 0.0
    %355 = vmatpush1.msra.mxu0 0.0
    %356 = vmatprep.subr.mxu0 0.0
    %357 = vmatpush1.msra.mxu0 0.0
    %358 = vmatprep.subr.mxu0 0.0
    %359 = vmatpush1.msra.mxu0 0.0
    %360 = vmatprep.subr.mxu0 0.0
    %361 = vmatpush1.msra.mxu0 0.0
    %362 = vmatprep.subr.mxu0 0.0
    %363 = vmatpush1.msra.mxu0 0.0
    %364 = vmatprep.subr.mxu0 0.0
    %365 = vmatpush1.msra.mxu0 0.0
    %366 = vmatprep.subr.mxu0 0.0
    %367 = vmatpush1.msra.mxu0 0.0
    %368 = vmatprep.subr.mxu0 0.0
    %369 = vmatpush1.msra.mxu0 0.0
    %370 = vmatprep.subr.mxu0 0.0
    %371 = vmatpush1.msra.mxu0 0.0
    %372 = vmatprep.subr.mxu0 0.0
    %373 = vmatpush1.msra.mxu0 0.0
    %374 = vmatprep.mubr.f32.mxu0 0.0
    %375 = vmatmul.mubr.f32.gmra.mrb[0].mxu0 %v307
    %v376 = vpop.f32.mrb[0].mxu0
    %v377 = vadd.f32 %v218, %v376
    %v378 = vpop.f32.mrb[0].mxu0
    %379 = vdwg.mxu0
    %v380 = vadd.f32 %v309, %v377
    %v381 = vxor.u32 %v380, 2147483648
    %v382 = vmul.f32 %v381, 1.442695
    %v383 = vpow.pop %v382
    %v384 = vadd.f32 %v383, 1.0
    %v385 = vrcp.pop %v384
    %v386 = vmul.f32 1.0, %v385
    %387 = vrot.lane.b32.xlu0 %v386, 64
    %v388 = vpop.permute.xlu0 %387
    %389 = vrot.lane.b32.xlu0 %v386, 32
    %v390 = vpop.permute.xlu0 %389
    %v391 = vmul.f32 %v388, %v377
    %v392 = vadd.f32 %v309, %v391
    %v393 = vtanh.pop %v392
    %v394 = vsub.f32 1.0, %v390
    %v395 = vmul.f32 %v394, %v393
    %v396 = vmul.f32 %v390, %v307
    %v397 = vadd.f32 %v395, %v396
    %s398 = scalar_lea.vmem [#allocation3], 16
    %v399 = vld [vmem:[%s398] sm:$0xff]
    %400 = vmatprep.subr.mxu0 0.0
    %401 = vmatpush1.msra.mxu0 %v195
    %402 = vmatprep.subr.mxu0 0.0
    %403 = vmatpush1.msra.mxu0 %v196
    %404 = vmatprep.subr.mxu0 0.0
    %405 = vmatpush1.msra.mxu0 %v197
    %406 = vmatprep.subr.mxu0 0.0
    %407 = vmatpush1.msra.mxu0 %v198
    %408 = vmatprep.subr.mxu0 0.0
    %409 = vmatpush1.msra.mxu0 %v199
    %410 = vmatprep.subr.mxu0 0.0
    %411 = vmatpush1.msra.mxu0 %v200
    %412 = vmatprep.subr.mxu0 0.0
    %413 = vmatpush1.msra.mxu0 %v201
    %414 = vmatprep.subr.mxu0 0.0
    %415 = vmatpush1.msra.mxu0 %v202
    %416 = vmatprep.subr.mxu0 0.0
    %417 = vmatpush1.msra.mxu0 %v203
    %418 = vmatprep.subr.mxu0 0.0
    %419 = vmatpush1.msra.mxu0 %v204
    %420 = vmatprep.subr.mxu0 0.0
    %421 = vmatpush1.msra.mxu0 %v205
    %422 = vmatprep.subr.mxu0 0.0
    %423 = vmatpush1.msra.mxu0 %v206
    %424 = vmatprep.subr.mxu0 0.0
    %425 = vmatpush1.msra.mxu0 %v207
    %426 = vmatprep.subr.mxu0 0.0
    %427 = vmatpush1.msra.mxu0 %v208
    %428 = vmatprep.subr.mxu0 0.0
    %429 = vmatpush1.msra.mxu0 %v209
    %430 = vmatprep.subr.mxu0 0.0
    %431 = vmatpush1.msra.mxu0 %v210
    %432 = vmatprep.subr.mxu0 0.0
    %433 = vmatpush1.msra.mxu0 0.0
    %434 = vmatprep.subr.mxu0 0.0
    %435 = vmatpush1.msra.mxu0 0.0
    %436 = vmatprep.subr.mxu0 0.0
    %437 = vmatpush1.msra.mxu0 0.0
    %438 = vmatprep.subr.mxu0 0.0
    %439 = vmatpush1.msra.mxu0 0.0
    %440 = vmatprep.subr.mxu0 0.0
    %441 = vmatpush1.msra.mxu0 0.0
    %442 = vmatprep.subr.mxu0 0.0
    %443 = vmatpush1.msra.mxu0 0.0
    %444 = vmatprep.subr.mxu0 0.0
    %445 = vmatpush1.msra.mxu0 0.0
    %446 = vmatprep.subr.mxu0 0.0
    %447 = vmatpush1.msra.mxu0 0.0
    %448 = vmatprep.subr.mxu0 0.0
    %449 = vmatpush1.msra.mxu0 0.0
    %450 = vmatprep.subr.mxu0 0.0
    %451 = vmatpush1.msra.mxu0 0.0
    %452 = vmatprep.subr.mxu0 0.0
    %453 = vmatpush1.msra.mxu0 0.0
    %454 = vmatprep.subr.mxu0 0.0
    %455 = vmatpush1.msra.mxu0 0.0
    %456 = vmatprep.subr.mxu0 0.0
    %457 = vmatpush1.msra.mxu0 0.0
    %458 = vmatprep.subr.mxu0 0.0
    %459 = vmatpush1.msra.mxu0 0.0
    %460 = vmatprep.subr.mxu0 0.0
    %461 = vmatpush1.msra.mxu0 0.0
    %462 = vmatprep.subr.mxu0 0.0
    %463 = vmatpush1.msra.mxu0 0.0
    %464 = vmatprep.mubr.f32.mxu0 0.0
    %465 = vmatmul.mubr.f32.gmra.mrb[0].mxu0 %v397
    %v466 = vpop.f32.mrb[0].mxu0
    %v467 = vadd.f32 %v218, %v466
    %v468 = vpop.f32.mrb[0].mxu0
    %469 = vdwg.mxu0
    %v470 = vadd.f32 %v399, %v467
    %v471 = vxor.u32 %v470, 2147483648
    %v472 = vmul.f32 %v471, 1.442695
    %v473 = vpow.pop %v472
    %v474 = vadd.f32 %v473, 1.0
    %v475 = vrcp.pop %v474
    %v476 = vmul.f32 1.0, %v475
    %477 = vrot.lane.b32.xlu0 %v476, 64
    %v478 = vpop.permute.xlu0 %477
    %479 = vrot.lane.b32.xlu0 %v476, 32
    %v480 = vpop.permute.xlu0 %479
    %v481 = vmul.f32 %v478, %v467
    %v482 = vadd.f32 %v399, %v481
    %v483 = vtanh.pop %v482
    %v484 = vsub.f32 1.0, %v480
    %v485 = vmul.f32 %v484, %v483
    %v486 = vmul.f32 %v480, %v397
    %v487 = vadd.f32 %v485, %v486
    %s488 = scalar_lea.vmem [#allocation3], 24
    %v489 = vld [vmem:[%s488] sm:$0xff]
    %490 = vmatprep.subr.mxu0 0.0
    %491 = vmatpush1.msra.mxu0 %v195
    %492 = vmatprep.subr.mxu0 0.0
    %493 = vmatpush1.msra.mxu0 %v196
    %494 = vmatprep.subr.mxu0 0.0
    %495 = vmatpush1.msra.mxu0 %v197
    %496 = vmatprep.subr.mxu0 0.0
    %497 = vmatpush1.msra.mxu0 %v198
    %498 = vmatprep.subr.mxu0 0.0
    %499 = vmatpush1.msra.mxu0 %v199
    %500 = vmatprep.subr.mxu0 0.0
    %501 = vmatpush1.msra.mxu0 %v200
    %502 = vmatprep.subr.mxu0 0.0
    %503 = vmatpush1.msra.mxu0 %v201
    %504 = vmatprep.subr.mxu0 0.0
    %505 = vmatpush1.msra.mxu0 %v202
    %506 = vmatprep.subr.mxu0 0.0
    %507 = vmatpush1.msra.mxu0 %v203
    %508 = vmatprep.subr.mxu0 0.0
    %509 = vmatpush1.msra.mxu0 %v204
    %510 = vmatprep.subr.mxu0 0.0
    %511 = vmatpush1.msra.mxu0 %v205
    %512 = vmatprep.subr.mxu0 0.0
    %513 = vmatpush1.msra.mxu0 %v206
    %514 = vmatprep.subr.mxu0 0.0
    %515 = vmatpush1.msra.mxu0 %v207
    %516 = vmatprep.subr.mxu0 0.0
    %517 = vmatpush1.msra.mxu0 %v208
    %518 = vmatprep.subr.mxu0 0.0
    %519 = vmatpush1.msra.mxu0 %v209
    %520 = vmatprep.subr.mxu0 0.0
    %521 = vmatpush1.msra.mxu0 %v210
    %522 = vmatprep.subr.mxu0 0.0
    %523 = vmatpush1.msra.mxu0 0.0
    %524 = vmatprep.subr.mxu0 0.0
    %525 = vmatpush1.msra.mxu0 0.0
    %526 = vmatprep.subr.mxu0 0.0
    %527 = vmatpush1.msra.mxu0 0.0
    %528 = vmatprep.subr.mxu0 0.0
    %529 = vmatpush1.msra.mxu0 0.0
    %530 = vmatprep.subr.mxu0 0.0
    %531 = vmatpush1.msra.mxu0 0.0
    %532 = vmatprep.subr.mxu0 0.0
    %533 = vmatpush1.msra.mxu0 0.0
    %534 = vmatprep.subr.mxu0 0.0
    %535 = vmatpush1.msra.mxu0 0.0
    %536 = vmatprep.subr.mxu0 0.0
    %537 = vmatpush1.msra.mxu0 0.0
    %538 = vmatprep.subr.mxu0 0.0
    %539 = vmatpush1.msra.mxu0 0.0
    %540 = vmatprep.subr.mxu0 0.0
    %541 = vmatpush1.msra.mxu0 0.0
    %542 = vmatprep.subr.mxu0 0.0
    %543 = vmatpush1.msra.mxu0 0.0
    %544 = vmatprep.subr.mxu0 0.0
    %545 = vmatpush1.msra.mxu0 0.0
    %546 = vmatprep.subr.mxu0 0.0
    %547 = vmatpush1.msra.mxu0 0.0
    %548 = vmatprep.subr.mxu0 0.0
    %549 = vmatpush1.msra.mxu0 0.0
    %550 = vmatprep.subr.mxu0 0.0
    %551 = vmatpush1.msra.mxu0 0.0
    %552 = vmatprep.subr.mxu0 0.0
    %553 = vmatpush1.msra.mxu0 0.0
    %554 = vmatprep.mubr.f32.mxu0 0.0
    %555 = vmatmul.mubr.f32.gmra.mrb[0].mxu0 %v487
    %v556 = vpop.f32.mrb[0].mxu0
    %v557 = vadd.f32 %v218, %v556
    %v558 = vpop.f32.mrb[0].mxu0
    %559 = vdwg.mxu0
    %v560 = vadd.f32 %v489, %v557
    %v561 = vxor.u32 %v560, 2147483648
    %v562 = vmul.f32 %v561, 1.442695
    %v563 = vpow.pop %v562
    %v564 = vadd.f32 %v563, 1.0
    %v565 = vrcp.pop %v564
    %v566 = vmul.f32 1.0, %v565
    %567 = vrot.lane.b32.xlu0 %v566, 64
    %v568 = vpop.permute.xlu0 %567
    %569 = vrot.lane.b32.xlu0 %v566, 32
    %v570 = vpop.permute.xlu0 %569
    %v571 = vmul.f32 %v568, %v557
    %v572 = vadd.f32 %v489, %v571
    %v573 = vtanh.pop %v572
    %v574 = vsub.f32 1.0, %v570
    %v575 = vmul.f32 %v574, %v573
    %v576 = vmul.f32 %v570, %v487
    %v577 = vadd.f32 %v575, %v576
    %s578 = scalar_lea.vmem [#allocation3], 32
    %v579 = vld [vmem:[%s578] sm:$0xff]
    %580 = vmatprep.subr.mxu0 0.0
    %581 = vmatpush1.msra.mxu0 %v195
    %582 = vmatprep.subr.mxu0 0.0
    %583 = vmatpush1.msra.mxu0 %v196
    %584 = vmatprep.subr.mxu0 0.0
    %585 = vmatpush1.msra.mxu0 %v197
    %586 = vmatprep.subr.mxu0 0.0
    %587 = vmatpush1.msra.mxu0 %v198
    %588 = vmatprep.subr.mxu0 0.0
    %589 = vmatpush1.msra.mxu0 %v199
    %590 = vmatprep.subr.mxu0 0.0
    %591 = vmatpush1.msra.mxu0 %v200
    %592 = vmatprep.subr.mxu0 0.0
    %593 = vmatpush1.msra.mxu0 %v201
    %594 = vmatprep.subr.mxu0 0.0
    %595 = vmatpush1.msra.mxu0 %v202
    %596 = vmatprep.subr.mxu0 0.0
    %597 = vmatpush1.msra.mxu0 %v203
    %598 = vmatprep.subr.mxu0 0.0
    %599 = vmatpush1.msra.mxu0 %v204
    %600 = vmatprep.subr.mxu0 0.0
    %601 = vmatpush1.msra.mxu0 %v205
    %602 = vmatprep.subr.mxu0 0.0
    %603 = vmatpush1.msra.mxu0 %v206
    %604 = vmatprep.subr.mxu0 0.0
    %605 = vmatpush1.msra.mxu0 %v207
    %606 = vmatprep.subr.mxu0 0.0
    %607 = vmatpush1.msra.mxu0 %v208
    %608 = vmatprep.subr.mxu0 0.0
    %609 = vmatpush1.msra.mxu0 %v209
    %610 = vmatprep.subr.mxu0 0.0
    %611 = vmatpush1.msra.mxu0 %v210
    %612 = vmatprep.subr.mxu0 0.0
    %613 = vmatpush1.msra.mxu0 0.0
    %614 = vmatprep.subr.mxu0 0.0
    %615 = vmatpush1.msra.mxu0 0.0
    %616 = vmatprep.subr.mxu0 0.0
    %617 = vmatpush1.msra.mxu0 0.0
    %618 = vmatprep.subr.mxu0 0.0
    %619 = vmatpush1.msra.mxu0 0.0
    %620 = vmatprep.subr.mxu0 0.0
    %621 = vmatpush1.msra.mxu0 0.0
    %622 = vmatprep.subr.mxu0 0.0
    %623 = vmatpush1.msra.mxu0 0.0
    %624 = vmatprep.subr.mxu0 0.0
    %625 = vmatpush1.msra.mxu0 0.0
    %626 = vmatprep.subr.mxu0 0.0
    %627 = vmatpush1.msra.mxu0 0.0
    %628 = vmatprep.subr.mxu0 0.0
    %629 = vmatpush1.msra.mxu0 0.0
    %630 = vmatprep.subr.mxu0 0.0
    %631 = vmatpush1.msra.mxu0 0.0
    %632 = vmatprep.subr.mxu0 0.0
    %633 = vmatpush1.msra.mxu0 0.0
    %634 = vmatprep.subr.mxu0 0.0
    %635 = vmatpush1.msra.mxu0 0.0
    %636 = vmatprep.subr.mxu0 0.0
    %637 = vmatpush1.msra.mxu0 0.0
    %638 = vmatprep.subr.mxu0 0.0
    %639 = vmatpush1.msra.mxu0 0.0
    %640 = vmatprep.subr.mxu0 0.0
    %641 = vmatpush1.msra.mxu0 0.0
    %642 = vmatprep.subr.mxu0 0.0
    %643 = vmatpush1.msra.mxu0 0.0
    %644 = vmatprep.mubr.f32.mxu0 0.0
    %645 = vmatmul.mubr.f32.gmra.mrb[0].mxu0 %v577
    %v646 = vpop.f32.mrb[0].mxu0
    %v647 = vadd.f32 %v218, %v646
    %v648 = vpop.f32.mrb[0].mxu0
    %649 = vdwg.mxu0
    %v650 = vadd.f32 %v579, %v647
    %v651 = vxor.u32 %v650, 2147483648
    %v652 = vmul.f32 %v651, 1.442695
    %v653 = vpow.pop %v652
    %v654 = vadd.f32 %v653, 1.0
    %v655 = vrcp.pop %v654
    %v656 = vmul.f32 1.0, %v655
    %657 = vrot.lane.b32.xlu0 %v656, 64
    %v658 = vpop.permute.xlu0 %657
    %659 = vrot.lane.b32.xlu0 %v656, 32
    %v660 = vpop.permute.xlu0 %659
    %v661 = vmul.f32 %v658, %v647
    %v662 = vadd.f32 %v579, %v661
    %v663 = vtanh.pop %v662
    %v664 = vsub.f32 1.0, %v660
    %v665 = vmul.f32 %v664, %v663
    %v666 = vmul.f32 %v660, %v577
    %v667 = vadd.f32 %v665, %v666
    %s668 = scalar_lea.vmem [#allocation3], 40
    %v669 = vld [vmem:[%s668] sm:$0xff]
    %670 = vmatprep.subr.mxu0 0.0
    %671 = vmatpush1.msra.mxu0 %v195
    %672 = vmatprep.subr.mxu0 0.0
    %673 = vmatpush1.msra.mxu0 %v196
    %674 = vmatprep.subr.mxu0 0.0
    %675 = vmatpush1.msra.mxu0 %v197
    %676 = vmatprep.subr.mxu0 0.0
    %677 = vmatpush1.msra.mxu0 %v198
    %678 = vmatprep.subr.mxu0 0.0
    %679 = vmatpush1.msra.mxu0 %v199
    %680 = vmatprep.subr.mxu0 0.0
    %681 = vmatpush1.msra.mxu0 %v200
    %682 = vmatprep.subr.mxu0 0.0
    %683 = vmatpush1.msra.mxu0 %v201
    %684 = vmatprep.subr.mxu0 0.0
    %685 = vmatpush1.msra.mxu0 %v202
    %686 = vmatprep.subr.mxu0 0.0
    %687 = vmatpush1.msra.mxu0 %v203
    %688 = vmatprep.subr.mxu0 0.0
    %689 = vmatpush1.msra.mxu0 %v204
    %690 = vmatprep.subr.mxu0 0.0
    %691 = vmatpush1.msra.mxu0 %v205
    %692 = vmatprep.subr.mxu0 0.0
    %693 = vmatpush1.msra.mxu0 %v206
    %694 = vmatprep.subr.mxu0 0.0
    %695 = vmatpush1.msra.mxu0 %v207
    %696 = vmatprep.subr.mxu0 0.0
    %697 = vmatpush1.msra.mxu0 %v208
    %698 = vmatprep.subr.mxu0 0.0
    %699 = vmatpush1.msra.mxu0 %v209
    %700 = vmatprep.subr.mxu0 0.0
    %701 = vmatpush1.msra.mxu0 %v210
    %702 = vmatprep.subr.mxu0 0.0
    %703 = vmatpush1.msra.mxu0 0.0
    %704 = vmatprep.subr.mxu0 0.0
    %705 = vmatpush1.msra.mxu0 0.0
    %706 = vmatprep.subr.mxu0 0.0
    %707 = vmatpush1.msra.mxu0 0.0
    %708 = vmatprep.subr.mxu0 0.0
    %709 = vmatpush1.msra.mxu0 0.0
    %710 = vmatprep.subr.mxu0 0.0
    %711 = vmatpush1.msra.mxu0 0.0
    %712 = vmatprep.subr.mxu0 0.0
    %713 = vmatpush1.msra.mxu0 0.0
    %714 = vmatprep.subr.mxu0 0.0
    %715 = vmatpush1.msra.mxu0 0.0
    %716 = vmatprep.subr.mxu0 0.0
    %717 = vmatpush1.msra.mxu0 0.0
    %718 = vmatprep.subr.mxu0 0.0
    %719 = vmatpush1.msra.mxu0 0.0
    %720 = vmatprep.subr.mxu0 0.0
    %721 = vmatpush1.msra.mxu0 0.0
    %722 = vmatprep.subr.mxu0 0.0
    %723 = vmatpush1.msra.mxu0 0.0
    %724 = vmatprep.subr.mxu0 0.0
    %725 = vmatpush1.msra.mxu0 0.0
    %726 = vmatprep.subr.mxu0 0.0
    %727 = vmatpush1.msra.mxu0 0.0
    %728 = vmatprep.subr.mxu0 0.0
    %729 = vmatpush1.msra.mxu0 0.0
    %730 = vmatprep.subr.mxu0 0.0
    %731 = vmatpush1.msra.mxu0 0.0
    %732 = vmatprep.subr.mxu0 0.0
    %733 = vmatpush1.msra.mxu0 0.0
    %734 = vmatprep.mubr.f32.mxu0 0.0
    %735 = vmatmul.mubr.f32.gmra.mrb[0].mxu0 %v667
    %v736 = vpop.f32.mrb[0].mxu0
    %v737 = vadd.f32 %v218, %v736
    %v738 = vpop.f32.mrb[0].mxu0
    %739 = vdwg.mxu0
    %v740 = vadd.f32 %v669, %v737
    %v741 = vxor.u32 %v740, 2147483648
    %v742 = vmul.f32 %v741, 1.442695
    %v743 = vpow.pop %v742
    %v744 = vadd.f32 %v743, 1.0
    %v745 = vrcp.pop %v744
    %v746 = vmul.f32 1.0, %v745
    %747 = vrot.lane.b32.xlu0 %v746, 64
    %v748 = vpop.permute.xlu0 %747
    %749 = vrot.lane.b32.xlu0 %v746, 32
    %v750 = vpop.permute.xlu0 %749
    %v751 = vmul.f32 %v748, %v737
    %v752 = vadd.f32 %v669, %v751
    %v753 = vtanh.pop %v752
    %v754 = vsub.f32 1.0, %v750
    %v755 = vmul.f32 %v754, %v753
    %v756 = vmul.f32 %v750, %v667
    %v757 = vadd.f32 %v755, %v756
    %s758 = scalar_lea.vmem [#allocation3], 48
    %v759 = vld [vmem:[%s758] sm:$0xff]
    %760 = vmatprep.subr.mxu0 0.0
    %761 = vmatpush1.msra.mxu0 %v195
    %762 = vmatprep.subr.mxu0 0.0
    %763 = vmatpush1.msra.mxu0 %v196
    %764 = vmatprep.subr.mxu0 0.0
    %765 = vmatpush1.msra.mxu0 %v197
    %766 = vmatprep.subr.mxu0 0.0
    %767 = vmatpush1.msra.mxu0 %v198
    %768 = vmatprep.subr.mxu0 0.0
    %769 = vmatpush1.msra.mxu0 %v199
    %770 = vmatprep.subr.mxu0 0.0
    %771 = vmatpush1.msra.mxu0 %v200
    %772 = vmatprep.subr.mxu0 0.0
    %773 = vmatpush1.msra.mxu0 %v201
    %774 = vmatprep.subr.mxu0 0.0
    %775 = vmatpush1.msra.mxu0 %v202
    %776 = vmatprep.subr.mxu0 0.0
    %777 = vmatpush1.msra.mxu0 %v203
    %778 = vmatprep.subr.mxu0 0.0
    %779 = vmatpush1.msra.mxu0 %v204
    %780 = vmatprep.subr.mxu0 0.0
    %781 = vmatpush1.msra.mxu0 %v205
    %782 = vmatprep.subr.mxu0 0.0
    %783 = vmatpush1.msra.mxu0 %v206
    %784 = vmatprep.subr.mxu0 0.0
    %785 = vmatpush1.msra.mxu0 %v207
    %786 = vmatprep.subr.mxu0 0.0
    %787 = vmatpush1.msra.mxu0 %v208
    %788 = vmatprep.subr.mxu0 0.0
    %789 = vmatpush1.msra.mxu0 %v209
    %790 = vmatprep.subr.mxu0 0.0
    %791 = vmatpush1.msra.mxu0 %v210
    %792 = vmatprep.subr.mxu0 0.0
    %793 = vmatpush1.msra.mxu0 0.0
    %794 = vmatprep.subr.mxu0 0.0
    %795 = vmatpush1.msra.mxu0 0.0
    %796 = vmatprep.subr.mxu0 0.0
    %797 = vmatpush1.msra.mxu0 0.0
    %798 = vmatprep.subr.mxu0 0.0
    %799 = vmatpush1.msra.mxu0 0.0
    %800 = vmatprep.subr.mxu0 0.0
    %801 = vmatpush1.msra.mxu0 0.0
    %802 = vmatprep.subr.mxu0 0.0
    %803 = vmatpush1.msra.mxu0 0.0
    %804 = vmatprep.subr.mxu0 0.0
    %805 = vmatpush1.msra.mxu0 0.0
    %806 = vmatprep.subr.mxu0 0.0
    %807 = vmatpush1.msra.mxu0 0.0
    %808 = vmatprep.subr.mxu0 0.0
    %809 = vmatpush1.msra.mxu0 0.0
    %810 = vmatprep.subr.mxu0 0.0
    %811 = vmatpush1.msra.mxu0 0.0
    %812 = vmatprep.subr.mxu0 0.0
    %813 = vmatpush1.msra.mxu0 0.0
    %814 = vmatprep.subr.mxu0 0.0
    %815 = vmatpush1.msra.mxu0 0.0
    %816 = vmatprep.subr.mxu0 0.0
    %817 = vmatpush1.msra.mxu0 0.0
    %818 = vmatprep.subr.mxu0 0.0
    %819 = vmatpush1.msra.mxu0 0.0
    %820 = vmatprep.subr.mxu0 0.0
    %821 = vmatpush1.msra.mxu0 0.0
    %822 = vmatprep.subr.mxu0 0.0
    %823 = vmatpush1.msra.mxu0 0.0
    %824 = vmatprep.mubr.f32.mxu0 0.0
    %825 = vmatmul.mubr.f32.gmra.mrb[0].mxu0 %v757
    %v826 = vpop.f32.mrb[0].mxu0
    %v827 = vadd.f32 %v218, %v826
    %v828 = vpop.f32.mrb[0].mxu0
    %829 = vdwg.mxu0
    %v830 = vadd.f32 %v759, %v827
    %v831 = vxor.u32 %v830, 2147483648
    %v832 = vmul.f32 %v831, 1.442695
    %v833 = vpow.pop %v832
    %v834 = vadd.f32 %v833, 1.0
    %v835 = vrcp.pop %v834
    %v836 = vmul.f32 1.0, %v835
    %837 = vrot.lane.b32.xlu0 %v836, 64
    %v838 = vpop.permute.xlu0 %837
    %839 = vrot.lane.b32.xlu0 %v836, 32
    %v840 = vpop.permute.xlu0 %839
    %v841 = vmul.f32 %v838, %v827
    %v842 = vadd.f32 %v759, %v841
    %v843 = vtanh.pop %v842
    %v844 = vsub.f32 1.0, %v840
    %v845 = vmul.f32 %v844, %v843
    %v846 = vmul.f32 %v840, %v757
    %v847 = vadd.f32 %v845, %v846
    %s848 = scalar_lea.vmem [#allocation3], 56
    %v849 = vld [vmem:[%s848] sm:$0xff]
    %850 = vmatprep.subr.mxu0 0.0
    %851 = vmatpush1.msra.mxu0 %v195
    %852 = vmatprep.subr.mxu0 0.0
    %853 = vmatpush1.msra.mxu0 %v196
    %854 = vmatprep.subr.mxu0 0.0
    %855 = vmatpush1.msra.mxu0 %v197
    %856 = vmatprep.subr.mxu0 0.0
    %857 = vmatpush1.msra.mxu0 %v198
    %858 = vmatprep.subr.mxu0 0.0
    %859 = vmatpush1.msra.mxu0 %v199
    %860 = vmatprep.subr.mxu0 0.0
    %861 = vmatpush1.msra.mxu0 %v200
    %862 = vmatprep.subr.mxu0 0.0
    %863 = vmatpush1.msra.mxu0 %v201
    %864 = vmatprep.subr.mxu0 0.0
    %865 = vmatpush1.msra.mxu0 %v202
    %866 = vmatprep.subr.mxu0 0.0
    %867 = vmatpush1.msra.mxu0 %v203
    %868 = vmatprep.subr.mxu0 0.0
    %869 = vmatpush1.msra.mxu0 %v204
    %870 = vmatprep.subr.mxu0 0.0
    %871 = vmatpush1.msra.mxu0 %v205
    %872 = vmatprep.subr.mxu0 0.0
    %873 = vmatpush1.msra.mxu0 %v206
    %874 = vmatprep.subr.mxu0 0.0
    %875 = vmatpush1.msra.mxu0 %v207
    %876 = vmatprep.subr.mxu0 0.0
    %877 = vmatpush1.msra.mxu0 %v208
    %878 = vmatprep.subr.mxu0 0.0
    %879 = vmatpush1.msra.mxu0 %v209
    %880 = vmatprep.subr.mxu0 0.0
    %881 = vmatpush1.msra.mxu0 %v210
    %882 = vmatprep.subr.mxu0 0.0
    %883 = vmatpush1.msra.mxu0 0.0
    %884 = vmatprep.subr.mxu0 0.0
    %885 = vmatpush1.msra.mxu0 0.0
    %886 = vmatprep.subr.mxu0 0.0
    %887 = vmatpush1.msra.mxu0 0.0
    %888 = vmatprep.subr.mxu0 0.0
    %889 = vmatpush1.msra.mxu0 0.0
    %890 = vmatprep.subr.mxu0 0.0
    %891 = vmatpush1.msra.mxu0 0.0
    %892 = vmatprep.subr.mxu0 0.0
    %893 = vmatpush1.msra.mxu0 0.0
    %894 = vmatprep.subr.mxu0 0.0
    %895 = vmatpush1.msra.mxu0 0.0
    %896 = vmatprep.subr.mxu0 0.0
    %897 = vmatpush1.msra.mxu0 0.0
    %898 = vmatprep.subr.mxu0 0.0
    %899 = vmatpush1.msra.mxu0 0.0
    %900 = vmatprep.subr.mxu0 0.0
    %901 = vmatpush1.msra.mxu0 0.0
    %902 = vmatprep.subr.mxu0 0.0
    %903 = vmatpush1.msra.mxu0 0.0
    %904 = vmatprep.subr.mxu0 0.0
    %905 = vmatpush1.msra.mxu0 0.0
    %906 = vmatprep.subr.mxu0 0.0
    %907 = vmatpush1.msra.mxu0 0.0
    %908 = vmatprep.subr.mxu0 0.0
    %909 = vmatpush1.msra.mxu0 0.0
    %910 = vmatprep.subr.mxu0 0.0
    %911 = vmatpush1.msra.mxu0 0.0
    %912 = vmatprep.subr.mxu0 0.0
    %913 = vmatpush1.msra.mxu0 0.0
    %914 = vmatprep.mubr.f32.mxu0 0.0
    %915 = vmatmul.mubr.f32.gmra.mrb[0].mxu0 %v847
    %v916 = vpop.f32.mrb[0].mxu0
    %v917 = vadd.f32 %v218, %v916
    %v918 = vpop.f32.mrb[0].mxu0
    %919 = vdwg.mxu0
    %v920 = vadd.f32 %v849, %v917
    %v921 = vxor.u32 %v920, 2147483648
    %v922 = vmul.f32 %v921, 1.442695
    %v923 = vpow.pop %v922
    %v924 = vadd.f32 %v923, 1.0
    %v925 = vrcp.pop %v924
    %v926 = vmul.f32 1.0, %v925
    %927 = vrot.lane.b32.xlu0 %v926, 64
    %v928 = vpop.permute.xlu0 %927
    %929 = vrot.lane.b32.xlu0 %v926, 32
    %v930 = vpop.permute.xlu0 %929
    %v931 = vmul.f32 %v928, %v917
    %v932 = vadd.f32 %v849, %v931
    %v933 = vtanh.pop %v932
    %v934 = vsub.f32 1.0, %v930
    %v935 = vmul.f32 %v934, %v933
    %v936 = vmul.f32 %v930, %v847
    %v937 = vadd.f32 %v935, %v936
    %938 = vst [vmem:[#allocation2] sm:$0xff] %v937
    // Predicated region
    $region30: #{tpu_custom_call.1} parent=1 // pred_check
      %p939 = pneg %p35
    $region31: #{tpu_custom_call.1} parent=1 // pred_check_branch
      %941 = sbr.rel (%p939) target = $region33
    $region32: #{tpu_custom_call.1} parent=1 // pred_region
      %942 = vst [vmem:[#allocation7] sm:$0xff] %v937
    $region33: #{tpu_custom_call.1} parent=1 // pred_fallthru
      _
    // Predicated region
    $region34: #{tpu_custom_call.1} parent=1 // pred_check
      _
    $region35: #{tpu_custom_call.1} parent=1 // pred_check_branch
      %944 = sbr.rel (0) target = $region37
    $region36: #{tpu_custom_call.1} parent=1 // pred_region
      %s946 = ssub.s32 128, 128
      %947 = vsyncadd [#allocation6], %s946
      %s949 = sshll.u32 [#allocation7], 4
      %s950 = int_to_ptr.vmem [resolvable:$true] %s949
      %952 = dma.vmem_to_hbm [thread:$0]  %s950, 128, %s5, [#allocation6]
    $region37: #{tpu_custom_call.1} parent=1 // pred_fallthru
      _
    // Predicated region
    $region38: #{tpu_custom_call.1} parent=1 // pred_check
      _
    $region39: #{tpu_custom_call.1} parent=1 // pred_check_branch
      %954 = sbr.rel (0) target = $region41
    $region40: #{tpu_custom_call.1} parent=1 // pred_region
      %955 = dma.done [#allocation6], 128
    $region41: #{tpu_custom_call.1} parent=1 // pred_fallthru
      _
    %956 = vsyncpa [#allocation5], 1
    %957 = vsyncpa [#allocation6], 1

</llo_original>
